<compile_context>
chip_gen: v6e
topology: v6e:2x2x1
jax: 0.10.0
libtpu: 0.0.40
codegen_flags: <defaults>
</compile_context>

<pallas_src>
import jax
import jax.numpy as jnp
from jax.experimental import pallas as pl
from jax.experimental.pallas import tpu as pltpu

N_NODES = 100
IN_CHANNELS = 16
HIDDEN_CHANNELS = 32
OUT_CHANNELS = 16
N_EDGES = 500
BN_EPS = 1e-5
PAD = 128  # padded node / contraction / hidden / out extent (full vreg & MXU tiles)


# ----------------------------------------------------------------------------
# Kernel: one fused forward pass per grid step (one graph per step).
#   afx_ref : (1, PAD, PAD)  bf16   [A | x | 0]  rows padded to PAD
#   w_ref   : (4, PAD, PAD)  bf16   [Wfront', W1, W2', W3']  (zero padded)
#   b_ref   : (8, PAD)       f32    rows 0..3 = [b_front', b1, b2', b3']
#   out_ref : (1, PAD, PAD)  f32    lane-dense output slab (slice [:N, :OUT] outside)
# ----------------------------------------------------------------------------
def linkx_kernel(afx_ref, w_ref, b_ref, out_ref):
    f32 = jnp.float32
    bf16 = jnp.bfloat16

    # Fused front end: [A | x] @ [We'; Wn'] + (be' + bn')   (cat_lin1/2 folded in)
    h = jnp.dot(afx_ref[0], w_ref[0], preferred_element_type=f32) + b_ref[0:1, :]
    h = jnp.maximum(h, 0.0)                       # outer relu: final_mlp(out.relu_())

    # final MLP layer 1 (act_first relu; BN1 folded into W2'/b2')
    h = jnp.dot(h.astype(bf16), w_ref[1], preferred_element_type=f32) + b_ref[1:2, :]
    h = jnp.maximum(h, 0.0)

    # final MLP layer 2 (BN2 folded into W3'/b3')
    h = jnp.dot(h.astype(bf16), w_ref[2], preferred_element_type=f32) + b_ref[2:3, :]
    h = jnp.maximum(h, 0.0)

    # final MLP layer 3 (plain last)
    out_ref[0] = jnp.dot(h.astype(bf16), w_ref[3], preferred_element_type=f32) + b_ref[3:4, :]


def linkx_forward(afx_b, w_pack, b_pack):
    """afx_b: (B, PAD, PAD) bf16; returns (B, PAD, PAD) f32 padded output slab."""
    B = afx_b.shape[0]
    flops = 4 * 2 * PAD * PAD * PAD * B           # 4 MXU matmuls per graph
    bytes_accessed = int(afx_b.size * 2 + w_pack.size * 2
                         + b_pack.size * 4 + B * PAD * PAD * 4)
    return pl.pallas_call(
        linkx_kernel,
        out_shape=jax.ShapeDtypeStruct((B, PAD, PAD), jnp.float32),
        grid=(B,),
        in_specs=[
            pl.BlockSpec((1, PAD, PAD), lambda b: (b, 0, 0)),   # per-graph [A|x]
            pl.BlockSpec((4, PAD, PAD), lambda b: (0, 0, 0)),   # weights resident
            pl.BlockSpec((8, PAD), lambda b: (0, 0)),           # biases resident
        ],
        out_specs=pl.BlockSpec((1, PAD, PAD), lambda b: (b, 0, 0)),
        compiler_params=pltpu.CompilerParams(
            dimension_semantics=("parallel",)),   # shards batch across TCs on v7x
        cost_estimate=pl.CostEstimate(
            flops=flops, transcendentals=0, bytes_accessed=bytes_accessed),
    )(afx_b, w_pack, b_pack)


# ----------------------------------------------------------------------------
# Wrapper-side algebra / packing (exact, eval mode)
# ----------------------------------------------------------------------------
def fold_and_pack(p):
    f32 = jnp.float32
    I = jnp.eye(HIDDEN_CHANNELS, dtype=f32)

    # Fold cat_lin1 / cat_lin2 into the front-end weights.
    We_f = p["We"] @ (I + p["Wc1"])
    be_f = p["be"] @ (I + p["Wc1"]) + p["bc1"]
    Wn_f = p["Wn"] @ (I + p["Wc2"])
    bn_f = p["bn"] @ (I + p["Wc2"]) + p["bc2"]
    b_front = be_f + bn_f

    # Fold eval-mode BatchNorm into the following Linear.
    W2_f = p["s1"].T * p["W2"]
    b2_f = p["t1"] @ p["W2"] + p["b2"]
    W3_f = p["s2"].T * p["W3"]
    b3_f = p["t2"] @ p["W3"] + p["b3"]

    # One packed, zero-padded weight slab (single DMA, full MXU tiles).
    w_pack = jnp.zeros((4, PAD, PAD), f32)
    w_pack = w_pack.at[0, :N_NODES, :HIDDEN_CHANNELS].set(We_f)
    w_pack = w_pack.at[0, N_NODES:N_NODES + IN_CHANNELS, :HIDDEN_CHANNELS].set(Wn_f)
    w_pack = w_pack.at[1, :HIDDEN_CHANNELS, :HIDDEN_CHANNELS].set(p["W1"])
    w_pack = w_pack.at[2, :HIDDEN_CHANNELS, :HIDDEN_CHANNELS].set(W2_f)
    w_pack = w_pack.at[3, :HIDDEN_CHANNELS, :OUT_CHANNELS].set(W3_f)
    w_pack = w_pack.astype(jnp.bfloat16)

    # One packed bias slab (f32).
    b_pack = jnp.zeros((8, PAD), f32)
    b_pack = b_pack.at[0, :HIDDEN_CHANNELS].set(b_front[0])
    b_pack = b_pack.at[1, :HIDDEN_CHANNELS].set(p["b1"][0])
    b_pack = b_pack.at[2, :HIDDEN_CHANNELS].set(b2_f[0])
    b_pack = b_pack.at[3, :OUT_CHANNELS].set(b3_f[0])
    return w_pack, b_pack


def pack_inputs(A, x):
    """Concatenate [A | x], zero-pad to (PAD, PAD), cast to bf16 (A is exact)."""
    afx = jnp.zeros((PAD, PAD), jnp.float32)
    afx = afx.at[:N_NODES, :N_NODES].set(A)
    afx = afx.at[:N_NODES, N_NODES:N_NODES + IN_CHANNELS].set(x)
    return afx.astype(jnp.bfloat16)
    # NOTE: for large graphs, dense A should instead be kept in HBM
    # (memory_space=pl.ANY) and streamed in row panels to respect v7x's 64 MiB VMEM.


# ----------------------------------------------------------------------------
# References
# ----------------------------------------------------------------------------
def linkx_reference(A, x, p):
    """Original (unfolded) f32 eval-mode semantics of the PyTorch module."""
    h_a = A @ p["We"] + p["be"]
    out = h_a + h_a @ p["Wc1"] + p["bc1"]
    h_x = x @ p["Wn"] + p["bn"]
    out = out + h_x
    out = out + h_x @ p["Wc2"] + p["bc2"]
    h = jnp.maximum(out, 0.0)
    h = jnp.maximum(h @ p["W1"] + p["b1"], 0.0) * p["s1"] + p["t1"]
    h = jnp.maximum(h @ p["W2"] + p["b2"], 0.0) * p["s2"] + p["t2"]
    return h @ p["W3"] + p["b3"]


def folded_reference(afx, w_pack, b_pack):
    """Precision-matched reference of the exact math the kernel performs."""
    f32, bf16 = jnp.float32, jnp.bfloat16
    h = jnp.dot(afx, w_pack[0], preferred_element_type=f32) + b_pack[0:1]
    h = jnp.maximum(h, 0.0)
    h = jnp.dot(h.astype(bf16), w_pack[1], preferred_element_type=f32) + b_pack[1:2]
    h = jnp.maximum(h, 0.0)
    h = jnp.dot(h.astype(bf16), w_pack[2], preferred_element_type=f32) + b_pack[2:3]
    h = jnp.maximum(h, 0.0)
    return jnp.dot(h.astype(bf16), w_pack[3], preferred_element_type=f32) + b_pack[3:4]


def make_params(key):
    """Deterministic parameter init (torch-Linear-style uniform bounds)."""
    def lin(k, fan_in, fan_out):
        k1, k2 = jax.random.split(k)
        bound = 1.0 / jnp.sqrt(jnp.float32(fan_in))
        W = jax.random.uniform(k1, (fan_in, fan_out), jnp.float32, -bound, bound)
        b = jax.random.uniform(k2, (1, fan_out), jnp.float32, -bound, bound)
        return W, b

    ks = jax.random.split(key, 8)
    p = {}
    # SparseLinear(num_nodes, hidden): kaiming-uniform(fan=N) ~ U(-1/sqrt(N), 1/sqrt(N))
    p["We"], p["be"] = lin(ks[0], N_NODES, HIDDEN_CHANNELS)
    # cat_lin1 / cat_lin2: Linear(hidden, hidden)
    p["Wc1"], p["bc1"] = lin(ks[1], HIDDEN_CHANNELS, HIDDEN_CHANNELS)
    p["Wc2"], p["bc2"] = lin(ks[2], HIDDEN_CHANNELS, HIDDEN_CHANNELS)
    # node_mlp: single Linear(in, hidden)   (num_node_layers=1, plain_last)
    p["Wn"], p["bn"] = lin(ks[3], IN_CHANNELS, HIDDEN_CHANNELS)
    # final_mlp: Linear(32,32) + BN + Linear(32,32) + BN + Linear(32,16)
    p["W1"], p["b1"] = lin(ks[4], HIDDEN_CHANNELS, HIDDEN_CHANNELS)
    p["W2"], p["b2"] = lin(ks[5], HIDDEN_CHANNELS, HIDDEN_CHANNELS)
    p["W3"], p["b3"] = lin(ks[6], HIDDEN_CHANNELS, OUT_CHANNELS)
    # BatchNorm1d (eval): gamma=1, beta=0, running_mean=0, running_var=1
    bn_scale = jnp.full((1, HIDDEN_CHANNELS), 1.0 / jnp.sqrt(1.0 + BN_EPS), jnp.float32)
    bn_shift = jnp.zeros((1, HIDDEN_CHANNELS), jnp.float32)
    p["s1"], p["t1"] = bn_scale, bn_shift
    p["s2"], p["t2"] = bn_scale, bn_shift
    return p


if __name__ == "__main__":
    root = jax.random.PRNGKey(0)
    k_x, k_edges, k_params = jax.random.split(root, 3)

    # Inputs consistent with the module: x (100, 16), edge_index (2, 500)
    x = jax.random.normal(k_x, (N_NODES, IN_CHANNELS), jnp.float32)
    edge_index = jax.random.randint(k_edges, (2, N_EDGES), 0, N_NODES)

    # Dense adjacency from edge_index (glue): A[dst, src] += 1, matching
    # MessagePassing(aggr='add') gathering weight[src] and scattering to dst.
    A = jnp.zeros((N_NODES, N_NODES), jnp.float32).at[
        edge_index[1], edge_index[0]].add(1.0)

    params = make_params(k_params)
    w_pack, b_pack = fold_and_pack(params)
    afx = pack_inputs(A, x)[None]          # batch of 1 graph (leading "parallel" axis)

    y_pad = linkx_forward(afx, w_pack, b_pack)
    y_pad = jax.block_until_ready(y_pad)
    y = y_pad[0, :N_NODES, :OUT_CHANNELS]
    assert y.shape == (N_NODES, OUT_CHANNELS)

    # 1) Kernel wiring check vs a precision-matched (bf16) folded reference.
    y_match = folded_reference(afx[0], w_pack, b_pack)[:N_NODES, :OUT_CHANNELS]
    assert bool(jnp.allclose(y, y_match, atol=1e-3, rtol=1e-3)), "kernel != folded ref"

    # 2) End-to-end check vs the original f32 (unfolded) module semantics;
    #    tolerance loosened slightly for the bf16 weight/activation cast.
    y_ref = linkx_reference(A, x, params)
    assert bool(jnp.allclose(y, y_ref, atol=5e-2, rtol=5e-2)), "mismatch vs f32 reference"

    # TODO(synk): training-mode dropout (p=0.5) and BatchNorm batch statistics
    # are not modeled; kernel implements eval/inference semantics (BN folded).
    print("KERNEL_OK")
</pallas_src>

<mosaic_0001>
module attributes {stable_mosaic.version = 11 : i64} {
  func.func @linkx_kernel(%arg0: i32, %arg1: memref<1x128x128xbf16, #tpu.memory_space<vmem>>, %arg2: memref<4x128x128xbf16, #tpu.memory_space<vmem>>, %arg3: memref<8x128xf32, #tpu.memory_space<vmem>>, %arg4: memref<1x128x128xf32, #tpu.memory_space<vmem>>) attributes {dimension_semantics = [#tpu.dimension_semantics<parallel>], iteration_bounds = array<i64: 1>, scalar_prefetch = 0 : i64, scratch_operands = 0 : i64, tpu.core_type = #tpu.core_type<tc>, window_params = [{transform_indices = @transform_0, window_bounds = array<i64: 1, 128, 128>}, {pipeline_mode = #tpu.pipeline_mode<synchronous>, transform_indices = @transform_1, window_bounds = array<i64: 4, 128, 128>}, {pipeline_mode = #tpu.pipeline_mode<synchronous>, transform_indices = @transform_2, window_bounds = array<i64: 8, 128>}, {transform_indices = @transform_3, window_bounds = array<i64: 1, 128, 128>}]} {
    %c0 = arith.constant 0 : index
    %c0_0 = arith.constant 0 : index
    %c0_1 = arith.constant 0 : index
    %0 = vector.load %arg1[%c0, %c0_0, %c0_1] : memref<1x128x128xbf16, #tpu.memory_space<vmem>>, vector<1x128x128xbf16>
    %1 = vector.shape_cast %0 : vector<1x128x128xbf16> to vector<128x128xbf16>
    %c0_2 = arith.constant 0 : index
    %c0_3 = arith.constant 0 : index
    %c0_4 = arith.constant 0 : index
    %2 = vector.load %arg2[%c0_2, %c0_3, %c0_4] : memref<4x128x128xbf16, #tpu.memory_space<vmem>>, vector<1x128x128xbf16>
    %3 = vector.shape_cast %2 : vector<1x128x128xbf16> to vector<128x128xbf16>
    %cst = arith.constant dense<0.000000e+00> : vector<128x128xf32>
    %4 = tpu.matmul %1, %3, %cst {dimension_numbers = #tpu.dot_dimension_numbers<[1], [0], [0], [1], [0, 0, 1, 1], [], []>} : vector<128x128xbf16>, vector<128x128xbf16>, vector<128x128xf32> -> vector<128x128xf32>
    %c0_5 = arith.constant 0 : index
    %c0_6 = arith.constant 0 : index
    %5 = vector.load %arg3[%c0_5, %c0_6] : memref<8x128xf32, #tpu.memory_space<vmem>>, vector<1x128xf32>
    %6 = vector.broadcast %5 : vector<1x128xf32> to vector<128x128xf32>
    %7 = arith.addf %4, %6 : vector<128x128xf32>
    %cst_7 = arith.constant 0.000000e+00 : f32
    %8 = vector.broadcast %cst_7 : f32 to vector<128x128xf32>
    %9 = arith.maximumf %7, %8 : vector<128x128xf32>
    %10 = arith.truncf %9 : vector<128x128xf32> to vector<128x128xbf16>
    %c1 = arith.constant 1 : index
    %c0_8 = arith.constant 0 : index
    %c0_9 = arith.constant 0 : index
    %11 = vector.load %arg2[%c1, %c0_8, %c0_9] : memref<4x128x128xbf16, #tpu.memory_space<vmem>>, vector<1x128x128xbf16>
    %12 = vector.shape_cast %11 : vector<1x128x128xbf16> to vector<128x128xbf16>
    %cst_10 = arith.constant dense<0.000000e+00> : vector<128x128xf32>
    %13 = tpu.matmul %10, %12, %cst_10 {dimension_numbers = #tpu.dot_dimension_numbers<[1], [0], [0], [1], [0, 0, 1, 1], [], []>} : vector<128x128xbf16>, vector<128x128xbf16>, vector<128x128xf32> -> vector<128x128xf32>
    %c1_11 = arith.constant 1 : index
    %c0_12 = arith.constant 0 : index
    %14 = vector.load %arg3[%c1_11, %c0_12] : memref<8x128xf32, #tpu.memory_space<vmem>>, vector<1x128xf32>
    %15 = vector.broadcast %14 : vector<1x128xf32> to vector<128x128xf32>
    %16 = arith.addf %13, %15 : vector<128x128xf32>
    %cst_13 = arith.constant 0.000000e+00 : f32
    %17 = vector.broadcast %cst_13 : f32 to vector<128x128xf32>
    %18 = arith.maximumf %16, %17 : vector<128x128xf32>
    %19 = arith.truncf %18 : vector<128x128xf32> to vector<128x128xbf16>
    %c2 = arith.constant 2 : index
    %c0_14 = arith.constant 0 : index
    %c0_15 = arith.constant 0 : index
    %20 = vector.load %arg2[%c2, %c0_14, %c0_15] : memref<4x128x128xbf16, #tpu.memory_space<vmem>>, vector<1x128x128xbf16>
    %21 = vector.shape_cast %20 : vector<1x128x128xbf16> to vector<128x128xbf16>
    %cst_16 = arith.constant dense<0.000000e+00> : vector<128x128xf32>
    %22 = tpu.matmul %19, %21, %cst_16 {dimension_numbers = #tpu.dot_dimension_numbers<[1], [0], [0], [1], [0, 0, 1, 1], [], []>} : vector<128x128xbf16>, vector<128x128xbf16>, vector<128x128xf32> -> vector<128x128xf32>
    %c2_17 = arith.constant 2 : index
    %c0_18 = arith.constant 0 : index
    %23 = vector.load %arg3[%c2_17, %c0_18] : memref<8x128xf32, #tpu.memory_space<vmem>>, vector<1x128xf32>
    %24 = vector.broadcast %23 : vector<1x128xf32> to vector<128x128xf32>
    %25 = arith.addf %22, %24 : vector<128x128xf32>
    %cst_19 = arith.constant 0.000000e+00 : f32
    %26 = vector.broadcast %cst_19 : f32 to vector<128x128xf32>
    %27 = arith.maximumf %25, %26 : vector<128x128xf32>
    %28 = arith.truncf %27 : vector<128x128xf32> to vector<128x128xbf16>
    %c3 = arith.constant 3 : index
    %c0_20 = arith.constant 0 : index
    %c0_21 = arith.constant 0 : index
    %29 = vector.load %arg2[%c3, %c0_20, %c0_21] : memref<4x128x128xbf16, #tpu.memory_space<vmem>>, vector<1x128x128xbf16>
    %30 = vector.shape_cast %29 : vector<1x128x128xbf16> to vector<128x128xbf16>
    %cst_22 = arith.constant dense<0.000000e+00> : vector<128x128xf32>
    %31 = tpu.matmul %28, %30, %cst_22 {dimension_numbers = #tpu.dot_dimension_numbers<[1], [0], [0], [1], [0, 0, 1, 1], [], []>} : vector<128x128xbf16>, vector<128x128xbf16>, vector<128x128xf32> -> vector<128x128xf32>
    %c3_23 = arith.constant 3 : index
    %c0_24 = arith.constant 0 : index
    %32 = vector.load %arg3[%c3_23, %c0_24] : memref<8x128xf32, #tpu.memory_space<vmem>>, vector<1x128xf32>
    %33 = vector.broadcast %32 : vector<1x128xf32> to vector<128x128xf32>
    %34 = arith.addf %31, %33 : vector<128x128xf32>
    %c0_25 = arith.constant 0 : index
    %c0_26 = arith.constant 0 : index
    %c0_27 = arith.constant 0 : index
    %35 = vector.load %arg4[%c0_25, %c0_26, %c0_27] : memref<1x128x128xf32, #tpu.memory_space<vmem>>, vector<1x128x128xf32>
    %36 = vector.shape_cast %35 : vector<1x128x128xf32> to vector<128x128xf32>
    %37 = vector.shape_cast %34 : vector<128x128xf32> to vector<1x128x128xf32>
    tpu.vector_store %arg4[%c0_25, %c0_26, %c0_27], %37 {strides = array<i32>} : memref<1x128x128xf32, #tpu.memory_space<vmem>>, vector<1x128x128xf32>,
    return
  }
  func.func @transform_0(%arg0: i32) -> (i32, i32, i32) {
    %c0_i32 = arith.constant 0 : i32
    %c0_i32_0 = arith.constant 0 : i32
    %c0_i32_1 = arith.constant 0 : i32
    return %arg0, %c0_i32, %c0_i32_0 : i32, i32, i32
  }
  func.func @transform_1(%arg0: i32) -> (i32, i32, i32) {
    %c0_i32 = arith.constant 0 : i32
    %c0_i32_0 = arith.constant 0 : i32
    %c0_i32_1 = arith.constant 0 : i32
    %c0_i32_2 = arith.constant 0 : i32
    return %c0_i32, %c0_i32_0, %c0_i32_1 : i32, i32, i32
  }
  func.func @transform_2(%arg0: i32) -> (i32, i32) {
    %c0_i32 = arith.constant 0 : i32
    %c0_i32_0 = arith.constant 0 : i32
    %c0_i32_1 = arith.constant 0 : i32
    return %c0_i32, %c0_i32_0 : i32, i32
  }
  func.func @transform_3(%arg0: i32) -> (i32, i32, i32) {
    %c0_i32 = arith.constant 0 : i32
    %c0_i32_0 = arith.constant 0 : i32
    %c0_i32_1 = arith.constant 0 : i32
    return %arg0, %c0_i32, %c0_i32_0 : i32, i32, i32
  }
}

</mosaic_0001>

<llo_original>
// kernel: tpu_custom_call.1
$region0: #{tpu_custom_call.1}
  #allocation0 [shape = 'u32[]', space=smem, size = 0x4, offset = 0x4, fixed_abs, tag = 'smem constant byte address 0x4 - core index']
  #allocation1 [shape = 'u32[144,128]{1,0:T(1,128)}', space=vmem, size = 0x12000, scoped, tag = 'internal scratch']
  %s0 = inlined_call_operand.hbm [shape: bf16[1,128,128], index: 0, kind: input, shape index: {}]
  %s1 = inlined_call_operand.hbm [shape: bf16[4,128,128], index: 1, kind: input, shape index: {}]
  %s2 = inlined_call_operand.hbm [shape: f32[8,128], index: 2, kind: input, shape index: {}]
  %s3 = inlined_call_operand.hbm [shape: f32[1,128,128], index: 3, kind: output, shape index: {}]
  %s4 = sld [smem:[#allocation0]]
  $region34: #{tpu_custom_call.1} parent=0
    _
  %s6 = ssub.s32 1, %s4
  %s7 = scalar_select 0, %s6, %s4
  $region1: #{tpu_custom_call.1} parent=0
    #allocation2 [shape = 'u8[32768]{0}', space=vmem, size = 0x8000, scoped, tag = 'input window, operand 0, single buffered']
    #allocation3 [shape = 's32[1]{0}', space=sflag, size = 0x4, scoped, tag = 'scoped memory for tpu_custom_call.1']
    #allocation4 [shape = 's32[1]{0}', space=sflag, size = 0x4, scoped, tag = 'scoped memory for tpu_custom_call.1']
    #allocation5 [shape = 'u8[131072]{0}', space=vmem, size = 0x20000, scoped, tag = 'input window, operand 1, single buffered']
    #allocation6 [shape = 's32[1]{0}', space=sflag, size = 0x4, scoped, tag = 'scoped memory for tpu_custom_call.1']
    #allocation7 [shape = 'u8[4096]{0}', space=vmem, size = 0x1000, scoped, tag = 'input window, operand 2, single buffered']
    #allocation8 [shape = 'u8[65536]{0}', space=vmem, size = 0x10000, scoped, tag = 'output window, operand 0, single buffered']
    %8 = vsyncpa [#allocation3], 0
    %9 = vsyncpa [#allocation6], 0
    %10 = vsyncpa [#allocation4], 0
    // Predicated region
    $region2: #{tpu_custom_call.1} parent=1 // pred_check
      _
    $region3: #{tpu_custom_call.1} parent=1 // pred_check_branch
      %12 = sbr.rel (0) target = $region5
    $region4: #{tpu_custom_call.1} parent=1 // pred_region
      %s14 = ssub.s32 1024, 1024
      %15 = vsyncadd [#allocation3], %s14
      %s16 = sshll.u32 [#allocation2], 4
      %s17 = int_to_ptr.vmem [resolvable:$true] %s16
      %22 = dma.hbm_to_vmem [thread:$0]  %s0, 1024, %s17, [#allocation3], 64, 64, 4
    $region5: #{tpu_custom_call.1} parent=1 // pred_fallthru
      _
    // Predicated region
    $region6: #{tpu_custom_call.1} parent=1 // pred_check
      _
    $region7: #{tpu_custom_call.1} parent=1 // pred_check_branch
      %24 = sbr.rel (0) target = $region9
    $region8: #{tpu_custom_call.1} parent=1 // pred_region
      %s26 = ssub.s32 4096, 4096
      %27 = vsyncadd [#allocation6], %s26
      %s28 = sshll.u32 [#allocation5], 4
      %s29 = int_to_ptr.vmem [resolvable:$true] %s28
      %34 = dma.hbm_to_vmem [thread:$0]  %s1, 4096, %s29, [#allocation6], 64, 64, 4
    $region9: #{tpu_custom_call.1} parent=1 // pred_fallthru
      _
    // Predicated region
    $region10: #{tpu_custom_call.1} parent=1 // pred_check
      _
    $region11: #{tpu_custom_call.1} parent=1 // pred_check_branch
      %36 = sbr.rel (0) target = $region13
    $region12: #{tpu_custom_call.1} parent=1 // pred_region
      %s38 = ssub.s32 128, 128
      %39 = vsyncadd [#allocation6], %s38
      %s41 = sshll.u32 [#allocation7], 4
      %s42 = int_to_ptr.vmem [resolvable:$true] %s41
      %44 = dma.hbm_to_vmem [thread:$0]  %s2, 128, %s42, [#allocation6]
    $region13: #{tpu_custom_call.1} parent=1 // pred_fallthru
      _
    // Predicated region
    $region14: #{tpu_custom_call.1} parent=1 // pred_check
      _
    $region15: #{tpu_custom_call.1} parent=1 // pred_check_branch
      %46 = sbr.rel (0) target = $region17
    $region16: #{tpu_custom_call.1} parent=1 // pred_region
      %47 = dma.done [#allocation3], 1024
    $region17: #{tpu_custom_call.1} parent=1 // pred_fallthru
      _
    // Predicated region
    $region18: #{tpu_custom_call.1} parent=1 // pred_check
      _
    $region19: #{tpu_custom_call.1} parent=1 // pred_check_branch
      %49 = sbr.rel (0) target = $region21
    $region20: #{tpu_custom_call.1} parent=1 // pred_region
      %50 = dma.done [#allocation6], 4096
    $region21: #{tpu_custom_call.1} parent=1 // pred_fallthru
      _
    // Predicated region
    $region22: #{tpu_custom_call.1} parent=1 // pred_check
      _
    $region23: #{tpu_custom_call.1} parent=1 // pred_check_branch
      %52 = sbr.rel (0) target = $region25
    $region24: #{tpu_custom_call.1} parent=1 // pred_region
      %53 = dma.done [#allocation6], 128
    $region25: #{tpu_custom_call.1} parent=1 // pred_fallthru
      _
    %v55 = vld [vmem:[#allocation2] sm:$0xf]
    %v56 = vld [vmem:[#allocation2 + $0x4] sm:$0xf]
    %v57 = vld [vmem:[#allocation2 + $0x8] sm:$0xf]
    %v58 = vld [vmem:[#allocation2 + $0xc] sm:$0xf]
    %v59 = vld [vmem:[#allocation2 + $0x10] sm:$0xf]
    %v60 = vld [vmem:[#allocation2 + $0x14] sm:$0xf]
    %v61 = vld [vmem:[#allocation2 + $0x18] sm:$0xf]
    %v62 = vld [vmem:[#allocation2 + $0x1c] sm:$0xf]
    %v63 = vld [vmem:[#allocation2 + $0x20] sm:$0xf]
    %v64 = vld [vmem:[#allocation2 + $0x24] sm:$0xf]
    %v65 = vld [vmem:[#allocation2 + $0x28] sm:$0xf]
    %v66 = vld [vmem:[#allocation2 + $0x2c] sm:$0xf]
    %v67 = vld [vmem:[#allocation2 + $0x30] sm:$0xf]
    %v68 = vld [vmem:[#allocation2 + $0x34] sm:$0xf]
    %v69 = vld [vmem:[#allocation2 + $0x38] sm:$0xf]
    %v70 = vld [vmem:[#allocation2 + $0x3c] sm:$0xf]
    %v71 = vld [vmem:[#allocation5] sm:$0xf]
    %v72 = vld [vmem:[#allocation5 + $0x4] sm:$0xf]
    %v73 = vld [vmem:[#allocation5 + $0x8] sm:$0xf]
    %v74 = vld [vmem:[#allocation5 + $0xc] sm:$0xf]
    %v75 = vld [vmem:[#allocation5 + $0x10] sm:$0xf]
    %v76 = vld [vmem:[#allocation5 + $0x14] sm:$0xf]
    %v77 = vld [vmem:[#allocation5 + $0x18] sm:$0xf]
    %v78 = vld [vmem:[#allocation5 + $0x1c] sm:$0xf]
    %v79 = vld [vmem:[#allocation5 + $0x20] sm:$0xf]
    %v80 = vld [vmem:[#allocation5 + $0x24] sm:$0xf]
    %v81 = vld [vmem:[#allocation5 + $0x28] sm:$0xf]
    %v82 = vld [vmem:[#allocation5 + $0x2c] sm:$0xf]
    %v83 = vld [vmem:[#allocation5 + $0x30] sm:$0xf]
    %v84 = vld [vmem:[#allocation5 + $0x34] sm:$0xf]
    %v85 = vld [vmem:[#allocation5 + $0x38] sm:$0xf]
    %v86 = vld [vmem:[#allocation5 + $0x3c] sm:$0xf]
    %v87 = vld [vmem:[#allocation7] sm:$0x1]
    %v88 = vlaneseq
    %v89 = vshrl.u32 %v88, 7
    %v90 = vsub.s32 0, %v89
    %v91 = vrot.slane %v87, %v90
    %v108 = vunpack.c.l.b16 %v55
    %v109 = vunpack.c.l.b16 %v56
    %v110 = vunpack.c.l.b16 %v57
    %v111 = vunpack.c.l.b16 %v58
    %v112 = vunpack.c.l.b16 %v59
    %v113 = vunpack.c.l.b16 %v60
    %v114 = vunpack.c.l.b16 %v61
    %v115 = vunpack.c.l.b16 %v62
    %v116 = vunpack.c.l.b16 %v63
    %v117 = vunpack.c.l.b16 %v64
    %v118 = vunpack.c.l.b16 %v65
    %v119 = vunpack.c.l.b16 %v66
    %v120 = vunpack.c.l.b16 %v67
    %v121 = vunpack.c.l.b16 %v68
    %v122 = vunpack.c.l.b16 %v69
    %v123 = vunpack.c.l.b16 %v70
    %v124 = vpack.c.b16 %v109, %v108
    %v125 = vpack.c.b16 %v111, %v110
    %v126 = vpack.c.b16 %v113, %v112
    %v127 = vpack.c.b16 %v115, %v114
    %v128 = vpack.c.b16 %v117, %v116
    %v129 = vpack.c.b16 %v119, %v118
    %v130 = vpack.c.b16 %v121, %v120
    %v131 = vpack.c.b16 %v123, %v122
    %v156 = vunpack.c.l.b16 %v71
    %v157 = vunpack.c.l.b16 %v72
    %v158 = vunpack.c.l.b16 %v73
    %v159 = vunpack.c.l.b16 %v74
    %v160 = vunpack.c.l.b16 %v75
    %v161 = vunpack.c.l.b16 %v76
    %v162 = vunpack.c.l.b16 %v77
    %v163 = vunpack.c.l.b16 %v78
    %v164 = vunpack.c.l.b16 %v79
    %v165 = vunpack.c.l.b16 %v80
    %v166 = vunpack.c.l.b16 %v81
    %v167 = vunpack.c.l.b16 %v82
    %v168 = vunpack.c.l.b16 %v83
    %v169 = vunpack.c.l.b16 %v84
    %v170 = vunpack.c.l.b16 %v85
    %v171 = vunpack.c.l.b16 %v86
    %v172 = vpack.c.b16 %v157, %v156
    %v173 = vpack.c.b16 %v159, %v158
    %v174 = vpack.c.b16 %v161, %v160
    %v175 = vpack.c.b16 %v163, %v162
    %v176 = vpack.c.b16 %v165, %v164
    %v177 = vpack.c.b16 %v167, %v166
    %v178 = vpack.c.b16 %v169, %v168
    %v179 = vpack.c.b16 %v171, %v170
    %188 = vmatprep.subr.bf16.mxu0 0
    %189 = vmatpush1.bf16.msra.mxu0 %v179
    %190 = vmatprep.subr.bf16.mxu0 0
    %191 = vmatpush1.bf16.msra.mxu0 %v178
    %192 = vmatprep.subr.bf16.mxu0 0
    %193 = vmatpush1.bf16.msra.mxu0 %v177
    %194 = vmatprep.subr.bf16.mxu0 0
    %195 = vmatpush1.bf16.msra.mxu0 %v176
    %196 = vmatprep.subr.bf16.mxu0 0
    %197 = vmatpush1.bf16.msra.mxu0 %v175
    %198 = vmatprep.subr.bf16.mxu0 0
    %199 = vmatpush1.bf16.msra.mxu0 %v174
    %200 = vmatprep.subr.bf16.mxu0 0
    %201 = vmatpush1.bf16.msra.mxu0 %v173
    %202 = vmatprep.subr.bf16.mxu0 0
    %203 = vmatpush1.bf16.msra.mxu0 %v172
    %204 = vmatprep.subr.bf16.mxu0 0
    %205 = vmatpush2.bf16.msra.mxu0 0
    %206 = vmatprep.subr.bf16.mxu0 0
    %207 = vmatpush2.bf16.msra.mxu0 0
    %208 = vmatprep.subr.bf16.mxu0 0
    %209 = vmatpush2.bf16.msra.mxu0 0
    %210 = vmatprep.subr.bf16.mxu0 0
    %211 = vmatpush2.bf16.msra.mxu0 0
    %212 = vmatprep.subr.bf16.mxu0 0
    %213 = vmatpush2.bf16.msra.mxu0 0
    %214 = vmatprep.subr.bf16.mxu0 0
    %215 = vmatpush2.bf16.msra.mxu0 0
    %216 = vmatprep.subr.bf16.mxu0 0
    %217 = vmatpush2.bf16.msra.mxu0 0
    %218 = vmatprep.subr.bf16.mxu0 0
    %219 = vmatpush2.bf16.msra.mxu0 0
    %220 = vmatprep.mubr.bf16.mxu0 0
    %221 = vmatmul.mubr.bf16.gmra.mxu0 %v124
    %v222 = vpop.f32.mrf.mxu0
    %v223 = vadd.f32 %v91, %v222
    %v224 = vpop.f32.mrf.mxu0
    %v225 = vpop.f32.mrf.mxu0
    %v226 = vadd.f32 %v91, %v225
    %v227 = vpop.f32.mrf.mxu0
    %228 = vmatprep.mubr.bf16.mxu0 0
    %229 = vmatmul.mubr.bf16.gmra.mxu0 %v125
    %v230 = vpop.f32.mrf.mxu0
    %v231 = vadd.f32 %v91, %v230
    %v232 = vpop.f32.mrf.mxu0
    %v233 = vpop.f32.mrf.mxu0
    %v234 = vadd.f32 %v91, %v233
    %v235 = vpop.f32.mrf.mxu0
    %236 = vmatprep.mubr.bf16.mxu0 0
    %237 = vmatmul.mubr.bf16.gmra.mxu0 %v126
    %v238 = vpop.f32.mrf.mxu0
    %v239 = vadd.f32 %v91, %v238
    %v240 = vpop.f32.mrf.mxu0
    %v241 = vpop.f32.mrf.mxu0
    %v242 = vadd.f32 %v91, %v241
    %v243 = vpop.f32.mrf.mxu0
    %244 = vmatprep.mubr.bf16.mxu0 0
    %245 = vmatmul.mubr.bf16.gmra.mxu0 %v127
    %v246 = vpop.f32.mrf.mxu0
    %v247 = vadd.f32 %v91, %v246
    %v248 = vpop.f32.mrf.mxu0
    %v249 = vpop.f32.mrf.mxu0
    %v250 = vadd.f32 %v91, %v249
    %v251 = vpop.f32.mrf.mxu0
    %252 = vmatprep.mubr.bf16.mxu0 0
    %253 = vmatmul.mubr.bf16.gmra.mxu0 %v128
    %v254 = vpop.f32.mrf.mxu0
    %v255 = vadd.f32 %v91, %v254
    %v256 = vpop.f32.mrf.mxu0
    %v257 = vpop.f32.mrf.mxu0
    %v258 = vadd.f32 %v91, %v257
    %v259 = vpop.f32.mrf.mxu0
    %260 = vmatprep.mubr.bf16.mxu0 0
    %261 = vmatmul.mubr.bf16.gmra.mxu0 %v129
    %v262 = vpop.f32.mrf.mxu0
    %v263 = vadd.f32 %v91, %v262
    %v264 = vpop.f32.mrf.mxu0
    %v265 = vpop.f32.mrf.mxu0
    %v266 = vadd.f32 %v91, %v265
    %v267 = vpop.f32.mrf.mxu0
    %268 = vmatprep.mubr.bf16.mxu0 0
    %269 = vmatmul.mubr.bf16.gmra.mxu0 %v130
    %v270 = vpop.f32.mrf.mxu0
    %v271 = vadd.f32 %v91, %v270
    %v272 = vpop.f32.mrf.mxu0
    %v273 = vpop.f32.mrf.mxu0
    %v274 = vadd.f32 %v91, %v273
    %v275 = vpop.f32.mrf.mxu0
    %276 = vmatprep.mubr.bf16.mxu0 0
    %277 = vmatmul.mubr.bf16.gmra.mxu0 %v131
    %v278 = vpop.f32.mrf.mxu0
    %v279 = vadd.f32 %v91, %v278
    %v280 = vpop.f32.mrf.mxu0
    %v281 = vpop.f32.mrf.mxu0
    %v282 = vadd.f32 %v91, %v281
    %v283 = vpop.f32.mrf.mxu0
    %284 = vdwg.mxu0
    %v285 = vmax.f32 %v223, 0.0
    %v286 = vmax.f32 %v226, 0.0
    %v287 = vmax.f32 %v231, 0.0
    %v288 = vmax.f32 %v234, 0.0
    %v289 = vmax.f32 %v239, 0.0
    %v290 = vmax.f32 %v242, 0.0
    %v291 = vmax.f32 %v247, 0.0
    %v292 = vmax.f32 %v250, 0.0
    %v293 = vmax.f32 %v255, 0.0
    %v294 = vmax.f32 %v258, 0.0
    %v295 = vmax.f32 %v263, 0.0
    %v296 = vmax.f32 %v266, 0.0
    %v297 = vmax.f32 %v271, 0.0
    %v298 = vmax.f32 %v274, 0.0
    %v299 = vmax.f32 %v279, 0.0
    %v300 = vmax.f32 %v282, 0.0
    %v301 = vpack.c.bf16 %v286, %v285
    %v302 = vpack.c.bf16 %v288, %v287
    %v303 = vpack.c.bf16 %v290, %v289
    %v304 = vpack.c.bf16 %v292, %v291
    %v305 = vpack.c.bf16 %v294, %v293
    %v306 = vpack.c.bf16 %v296, %v295
    %v307 = vpack.c.bf16 %v298, %v297
    %v308 = vpack.c.bf16 %v300, %v299
    %s309 = scalar_lea.vmem [#allocation5], 64
    %v310 = vld [vmem:[%s309] sm:$0xf]
    %v311 = vld [vmem:[%s309 + $0x4] sm:$0xf]
    %v312 = vld [vmem:[%s309 + $0x8] sm:$0xf]
    %v313 = vld [vmem:[%s309 + $0xc] sm:$0xf]
    %v314 = vld [vmem:[%s309 + $0x10] sm:$0xf]
    %v315 = vld [vmem:[%s309 + $0x14] sm:$0xf]
    %v316 = vld [vmem:[%s309 + $0x18] sm:$0xf]
    %v317 = vld [vmem:[%s309 + $0x1c] sm:$0xf]
    %v318 = vld [vmem:[%s309 + $0x20] sm:$0xf]
    %v319 = vld [vmem:[%s309 + $0x24] sm:$0xf]
    %v320 = vld [vmem:[%s309 + $0x28] sm:$0xf]
    %v321 = vld [vmem:[%s309 + $0x2c] sm:$0xf]
    %v322 = vld [vmem:[%s309 + $0x30] sm:$0xf]
    %v323 = vld [vmem:[%s309 + $0x34] sm:$0xf]
    %v324 = vld [vmem:[%s309 + $0x38] sm:$0xf]
    %v325 = vld [vmem:[%s309 + $0x3c] sm:$0xf]
    %v326 = vld [vmem:[#allocation7 + $0x1] sm:$0x1]
    %v327 = vlaneseq
    %v328 = vshrl.u32 %v327, 7
    %v329 = vsub.s32 0, %v328
    %v330 = vrot.slane %v326, %v329
    %v347 = vunpack.c.l.b16 %v310
    %v348 = vunpack.c.l.b16 %v311
    %v349 = vunpack.c.l.b16 %v312
    %v350 = vunpack.c.l.b16 %v313
    %v351 = vunpack.c.l.b16 %v314
    %v352 = vunpack.c.l.b16 %v315
    %v353 = vunpack.c.l.b16 %v316
    %v354 = vunpack.c.l.b16 %v317
    %v355 = vunpack.c.l.b16 %v318
    %v356 = vunpack.c.l.b16 %v319
    %v357 = vunpack.c.l.b16 %v320
    %v358 = vunpack.c.l.b16 %v321
    %v359 = vunpack.c.l.b16 %v322
    %v360 = vunpack.c.l.b16 %v323
    %v361 = vunpack.c.l.b16 %v324
    %v362 = vunpack.c.l.b16 %v325
    %v363 = vpack.c.b16 %v348, %v347
    %v364 = vpack.c.b16 %v350, %v349
    %v365 = vpack.c.b16 %v352, %v351
    %v366 = vpack.c.b16 %v354, %v353
    %v367 = vpack.c.b16 %v356, %v355
    %v368 = vpack.c.b16 %v358, %v357
    %v369 = vpack.c.b16 %v360, %v359
    %v370 = vpack.c.b16 %v362, %v361
    %379 = vmatprep.subr.bf16.mxu0 0
    %380 = vmatpush1.bf16.msra.mxu0 %v370
    %381 = vmatprep.subr.bf16.mxu0 0
    %382 = vmatpush1.bf16.msra.mxu0 %v369
    %383 = vmatprep.subr.bf16.mxu0 0
    %384 = vmatpush1.bf16.msra.mxu0 %v368
    %385 = vmatprep.subr.bf16.mxu0 0
    %386 = vmatpush1.bf16.msra.mxu0 %v367
    %387 = vmatprep.subr.bf16.mxu0 0
    %388 = vmatpush1.bf16.msra.mxu0 %v366
    %389 = vmatprep.subr.bf16.mxu0 0
    %390 = vmatpush1.bf16.msra.mxu0 %v365
    %391 = vmatprep.subr.bf16.mxu0 0
    %392 = vmatpush1.bf16.msra.mxu0 %v364
    %393 = vmatprep.subr.bf16.mxu0 0
    %394 = vmatpush1.bf16.msra.mxu0 %v363
    %395 = vmatprep.subr.bf16.mxu0 0
    %396 = vmatpush2.bf16.msra.mxu0 0
    %397 = vmatprep.subr.bf16.mxu0 0
    %398 = vmatpush2.bf16.msra.mxu0 0
    %399 = vmatprep.subr.bf16.mxu0 0
    %400 = vmatpush2.bf16.msra.mxu0 0
    %401 = vmatprep.subr.bf16.mxu0 0
    %402 = vmatpush2.bf16.msra.mxu0 0
    %403 = vmatprep.subr.bf16.mxu0 0
    %404 = vmatpush2.bf16.msra.mxu0 0
    %405 = vmatprep.subr.bf16.mxu0 0
    %406 = vmatpush2.bf16.msra.mxu0 0
    %407 = vmatprep.subr.bf16.mxu0 0
    %408 = vmatpush2.bf16.msra.mxu0 0
    %409 = vmatprep.subr.bf16.mxu0 0
    %410 = vmatpush2.bf16.msra.mxu0 0
    %411 = vmatprep.mubr.bf16.mxu0 0
    %412 = vmatmul.mubr.bf16.gmra.mxu0 %v301
    %v413 = vpop.f32.mrf.mxu0
    %v414 = vadd.f32 %v330, %v413
    %v415 = vpop.f32.mrf.mxu0
    %v416 = vpop.f32.mrf.mxu0
    %v417 = vadd.f32 %v330, %v416
    %v418 = vpop.f32.mrf.mxu0
    %419 = vmatprep.mubr.bf16.mxu0 0
    %420 = vmatmul.mubr.bf16.gmra.mxu0 %v302
    %v421 = vpop.f32.mrf.mxu0
    %v422 = vadd.f32 %v330, %v421
    %v423 = vpop.f32.mrf.mxu0
    %v424 = vpop.f32.mrf.mxu0
    %v425 = vadd.f32 %v330, %v424
    %v426 = vpop.f32.mrf.mxu0
    %427 = vmatprep.mubr.bf16.mxu0 0
    %428 = vmatmul.mubr.bf16.gmra.mxu0 %v303
    %v429 = vpop.f32.mrf.mxu0
    %v430 = vadd.f32 %v330, %v429
    %v431 = vpop.f32.mrf.mxu0
    %v432 = vpop.f32.mrf.mxu0
    %v433 = vadd.f32 %v330, %v432
    %v434 = vpop.f32.mrf.mxu0
    %435 = vmatprep.mubr.bf16.mxu0 0
    %436 = vmatmul.mubr.bf16.gmra.mxu0 %v304
    %v437 = vpop.f32.mrf.mxu0
    %v438 = vadd.f32 %v330, %v437
    %v439 = vpop.f32.mrf.mxu0
    %v440 = vpop.f32.mrf.mxu0
    %v441 = vadd.f32 %v330, %v440
    %v442 = vpop.f32.mrf.mxu0
    %443 = vmatprep.mubr.bf16.mxu0 0
    %444 = vmatmul.mubr.bf16.gmra.mxu0 %v305
    %v445 = vpop.f32.mrf.mxu0
    %v446 = vadd.f32 %v330, %v445
    %v447 = vpop.f32.mrf.mxu0
    %v448 = vpop.f32.mrf.mxu0
    %v449 = vadd.f32 %v330, %v448
    %v450 = vpop.f32.mrf.mxu0
    %451 = vmatprep.mubr.bf16.mxu0 0
    %452 = vmatmul.mubr.bf16.gmra.mxu0 %v306
    %v453 = vpop.f32.mrf.mxu0
    %v454 = vadd.f32 %v330, %v453
    %v455 = vpop.f32.mrf.mxu0
    %v456 = vpop.f32.mrf.mxu0
    %v457 = vadd.f32 %v330, %v456
    %v458 = vpop.f32.mrf.mxu0
    %459 = vmatprep.mubr.bf16.mxu0 0
    %460 = vmatmul.mubr.bf16.gmra.mxu0 %v307
    %v461 = vpop.f32.mrf.mxu0
    %v462 = vadd.f32 %v330, %v461
    %v463 = vpop.f32.mrf.mxu0
    %v464 = vpop.f32.mrf.mxu0
    %v465 = vadd.f32 %v330, %v464
    %v466 = vpop.f32.mrf.mxu0
    %467 = vmatprep.mubr.bf16.mxu0 0
    %468 = vmatmul.mubr.bf16.gmra.mxu0 %v308
    %v469 = vpop.f32.mrf.mxu0
    %v470 = vadd.f32 %v330, %v469
    %v471 = vpop.f32.mrf.mxu0
    %v472 = vpop.f32.mrf.mxu0
    %v473 = vadd.f32 %v330, %v472
    %v474 = vpop.f32.mrf.mxu0
    %475 = vdwg.mxu0
    %v476 = vmax.f32 %v414, 0.0
    %v477 = vmax.f32 %v417, 0.0
    %v478 = vmax.f32 %v422, 0.0
    %v479 = vmax.f32 %v425, 0.0
    %v480 = vmax.f32 %v430, 0.0
    %v481 = vmax.f32 %v433, 0.0
    %v482 = vmax.f32 %v438, 0.0
    %v483 = vmax.f32 %v441, 0.0
    %v484 = vmax.f32 %v446, 0.0
    %v485 = vmax.f32 %v449, 0.0
    %v486 = vmax.f32 %v454, 0.0
    %v487 = vmax.f32 %v457, 0.0
    %v488 = vmax.f32 %v462, 0.0
    %v489 = vmax.f32 %v465, 0.0
    %v490 = vmax.f32 %v470, 0.0
    %v491 = vmax.f32 %v473, 0.0
    %v492 = vpack.c.bf16 %v477, %v476
    %v493 = vpack.c.bf16 %v479, %v478
    %v494 = vpack.c.bf16 %v481, %v480
    %v495 = vpack.c.bf16 %v483, %v482
    %v496 = vpack.c.bf16 %v485, %v484
    %v497 = vpack.c.bf16 %v487, %v486
    %v498 = vpack.c.bf16 %v489, %v488
    %v499 = vpack.c.bf16 %v491, %v490
    %s500 = scalar_lea.vmem [#allocation5], 128
    %v501 = vld [vmem:[%s500] sm:$0xf]
    %v502 = vld [vmem:[%s500 + $0x4] sm:$0xf]
    %v503 = vld [vmem:[%s500 + $0x8] sm:$0xf]
    %v504 = vld [vmem:[%s500 + $0xc] sm:$0xf]
    %v505 = vld [vmem:[%s500 + $0x10] sm:$0xf]
    %v506 = vld [vmem:[%s500 + $0x14] sm:$0xf]
    %v507 = vld [vmem:[%s500 + $0x18] sm:$0xf]
    %v508 = vld [vmem:[%s500 + $0x1c] sm:$0xf]
    %v509 = vld [vmem:[%s500 + $0x20] sm:$0xf]
    %v510 = vld [vmem:[%s500 + $0x24] sm:$0xf]
    %v511 = vld [vmem:[%s500 + $0x28] sm:$0xf]
    %v512 = vld [vmem:[%s500 + $0x2c] sm:$0xf]
    %v513 = vld [vmem:[%s500 + $0x30] sm:$0xf]
    %v514 = vld [vmem:[%s500 + $0x34] sm:$0xf]
    %v515 = vld [vmem:[%s500 + $0x38] sm:$0xf]
    %v516 = vld [vmem:[%s500 + $0x3c] sm:$0xf]
    %v517 = vld [vmem:[#allocation7 + $0x2] sm:$0x1]
    %v518 = vlaneseq
    %v519 = vshrl.u32 %v518, 7
    %v520 = vsub.s32 0, %v519
    %v521 = vrot.slane %v517, %v520
    %v538 = vunpack.c.l.b16 %v501
    %v539 = vunpack.c.l.b16 %v502
    %v540 = vunpack.c.l.b16 %v503
    %v541 = vunpack.c.l.b16 %v504
    %v542 = vunpack.c.l.b16 %v505
    %v543 = vunpack.c.l.b16 %v506
    %v544 = vunpack.c.l.b16 %v507
    %v545 = vunpack.c.l.b16 %v508
    %v546 = vunpack.c.l.b16 %v509
    %v547 = vunpack.c.l.b16 %v510
    %v548 = vunpack.c.l.b16 %v511
    %v549 = vunpack.c.l.b16 %v512
    %v550 = vunpack.c.l.b16 %v513
    %v551 = vunpack.c.l.b16 %v514
    %v552 = vunpack.c.l.b16 %v515
    %v553 = vunpack.c.l.b16 %v516
    %v554 = vpack.c.b16 %v539, %v538
    %v555 = vpack.c.b16 %v541, %v540
    %v556 = vpack.c.b16 %v543, %v542
    %v557 = vpack.c.b16 %v545, %v544
    %v558 = vpack.c.b16 %v547, %v546
    %v559 = vpack.c.b16 %v549, %v548
    %v560 = vpack.c.b16 %v551, %v550
    %v561 = vpack.c.b16 %v553, %v552
    %570 = vmatprep.subr.bf16.mxu0 0
    %571 = vmatpush1.bf16.msra.mxu0 %v561
    %572 = vmatprep.subr.bf16.mxu0 0
    %573 = vmatpush1.bf16.msra.mxu0 %v560
    %574 = vmatprep.subr.bf16.mxu0 0
    %575 = vmatpush1.bf16.msra.mxu0 %v559
    %576 = vmatprep.subr.bf16.mxu0 0
    %577 = vmatpush1.bf16.msra.mxu0 %v558
    %578 = vmatprep.subr.bf16.mxu0 0
    %579 = vmatpush1.bf16.msra.mxu0 %v557
    %580 = vmatprep.subr.bf16.mxu0 0
    %581 = vmatpush1.bf16.msra.mxu0 %v556
    %582 = vmatprep.subr.bf16.mxu0 0
    %583 = vmatpush1.bf16.msra.mxu0 %v555
    %584 = vmatprep.subr.bf16.mxu0 0
    %585 = vmatpush1.bf16.msra.mxu0 %v554
    %586 = vmatprep.subr.bf16.mxu0 0
    %587 = vmatpush2.bf16.msra.mxu0 0
    %588 = vmatprep.subr.bf16.mxu0 0
    %589 = vmatpush2.bf16.msra.mxu0 0
    %590 = vmatprep.subr.bf16.mxu0 0
    %591 = vmatpush2.bf16.msra.mxu0 0
    %592 = vmatprep.subr.bf16.mxu0 0
    %593 = vmatpush2.bf16.msra.mxu0 0
    %594 = vmatprep.subr.bf16.mxu0 0
    %595 = vmatpush2.bf16.msra.mxu0 0
    %596 = vmatprep.subr.bf16.mxu0 0
    %597 = vmatpush2.bf16.msra.mxu0 0
    %598 = vmatprep.subr.bf16.mxu0 0
    %599 = vmatpush2.bf16.msra.mxu0 0
    %600 = vmatprep.subr.bf16.mxu0 0
    %601 = vmatpush2.bf16.msra.mxu0 0
    %602 = vmatprep.mubr.bf16.mxu0 0
    %603 = vmatmul.mubr.bf16.gmra.mxu0 %v492
    %v604 = vpop.f32.mrf.mxu0
    %v605 = vadd.f32 %v521, %v604
    %v606 = vpop.f32.mrf.mxu0
    %v607 = vpop.f32.mrf.mxu0
    %v608 = vadd.f32 %v521, %v607
    %v609 = vpop.f32.mrf.mxu0
    %610 = vmatprep.mubr.bf16.mxu0 0
    %611 = vmatmul.mubr.bf16.gmra.mxu0 %v493
    %v612 = vpop.f32.mrf.mxu0
    %v613 = vadd.f32 %v521, %v612
    %v614 = vpop.f32.mrf.mxu0
    %v615 = vpop.f32.mrf.mxu0
    %v616 = vadd.f32 %v521, %v615
    %v617 = vpop.f32.mrf.mxu0
    %618 = vmatprep.mubr.bf16.mxu0 0
    %619 = vmatmul.mubr.bf16.gmra.mxu0 %v494
    %v620 = vpop.f32.mrf.mxu0
    %v621 = vadd.f32 %v521, %v620
    %v622 = vpop.f32.mrf.mxu0
    %v623 = vpop.f32.mrf.mxu0
    %v624 = vadd.f32 %v521, %v623
    %v625 = vpop.f32.mrf.mxu0
    %626 = vmatprep.mubr.bf16.mxu0 0
    %627 = vmatmul.mubr.bf16.gmra.mxu0 %v495
    %v628 = vpop.f32.mrf.mxu0
    %v629 = vadd.f32 %v521, %v628
    %v630 = vpop.f32.mrf.mxu0
    %v631 = vpop.f32.mrf.mxu0
    %v632 = vadd.f32 %v521, %v631
    %v633 = vpop.f32.mrf.mxu0
    %634 = vmatprep.mubr.bf16.mxu0 0
    %635 = vmatmul.mubr.bf16.gmra.mxu0 %v496
    %v636 = vpop.f32.mrf.mxu0
    %v637 = vadd.f32 %v521, %v636
    %v638 = vpop.f32.mrf.mxu0
    %v639 = vpop.f32.mrf.mxu0
    %v640 = vadd.f32 %v521, %v639
    %v641 = vpop.f32.mrf.mxu0
    %642 = vmatprep.mubr.bf16.mxu0 0
    %643 = vmatmul.mubr.bf16.gmra.mxu0 %v497
    %v644 = vpop.f32.mrf.mxu0
    %v645 = vadd.f32 %v521, %v644
    %v646 = vpop.f32.mrf.mxu0
    %v647 = vpop.f32.mrf.mxu0
    %v648 = vadd.f32 %v521, %v647
    %v649 = vpop.f32.mrf.mxu0
    %650 = vmatprep.mubr.bf16.mxu0 0
    %651 = vmatmul.mubr.bf16.gmra.mxu0 %v498
    %v652 = vpop.f32.mrf.mxu0
    %v653 = vadd.f32 %v521, %v652
    %v654 = vpop.f32.mrf.mxu0
    %v655 = vpop.f32.mrf.mxu0
    %v656 = vadd.f32 %v521, %v655
    %v657 = vpop.f32.mrf.mxu0
    %658 = vmatprep.mubr.bf16.mxu0 0
    %659 = vmatmul.mubr.bf16.gmra.mxu0 %v499
    %v660 = vpop.f32.mrf.mxu0
    %v661 = vadd.f32 %v521, %v660
    %v662 = vpop.f32.mrf.mxu0
    %v663 = vpop.f32.mrf.mxu0
    %v664 = vadd.f32 %v521, %v663
    %v665 = vpop.f32.mrf.mxu0
    %666 = vdwg.mxu0
    %v667 = vmax.f32 %v605, 0.0
    %v668 = vmax.f32 %v608, 0.0
    %v669 = vmax.f32 %v613, 0.0
    %v670 = vmax.f32 %v616, 0.0
    %v671 = vmax.f32 %v621, 0.0
    %v672 = vmax.f32 %v624, 0.0
    %v673 = vmax.f32 %v629, 0.0
    %v674 = vmax.f32 %v632, 0.0
    %v675 = vmax.f32 %v637, 0.0
    %v676 = vmax.f32 %v640, 0.0
    %v677 = vmax.f32 %v645, 0.0
    %v678 = vmax.f32 %v648, 0.0
    %v679 = vmax.f32 %v653, 0.0
    %v680 = vmax.f32 %v656, 0.0
    %v681 = vmax.f32 %v661, 0.0
    %v682 = vmax.f32 %v664, 0.0
    %v683 = vpack.c.bf16 %v668, %v667
    %v684 = vpack.c.bf16 %v670, %v669
    %v685 = vpack.c.bf16 %v672, %v671
    %v686 = vpack.c.bf16 %v674, %v673
    %v687 = vpack.c.bf16 %v676, %v675
    %v688 = vpack.c.bf16 %v678, %v677
    %v689 = vpack.c.bf16 %v680, %v679
    %v690 = vpack.c.bf16 %v682, %v681
    %s691 = scalar_lea.vmem [#allocation5], 192
    %v692 = vld [vmem:[%s691] sm:$0xf]
    %v693 = vld [vmem:[%s691 + $0x4] sm:$0xf]
    %v694 = vld [vmem:[%s691 + $0x8] sm:$0xf]
    %v695 = vld [vmem:[%s691 + $0xc] sm:$0xf]
    %v696 = vld [vmem:[%s691 + $0x10] sm:$0xf]
    %v697 = vld [vmem:[%s691 + $0x14] sm:$0xf]
    %v698 = vld [vmem:[%s691 + $0x18] sm:$0xf]
    %v699 = vld [vmem:[%s691 + $0x1c] sm:$0xf]
    %v700 = vld [vmem:[%s691 + $0x20] sm:$0xf]
    %v701 = vld [vmem:[%s691 + $0x24] sm:$0xf]
    %v702 = vld [vmem:[%s691 + $0x28] sm:$0xf]
    %v703 = vld [vmem:[%s691 + $0x2c] sm:$0xf]
    %v704 = vld [vmem:[%s691 + $0x30] sm:$0xf]
    %v705 = vld [vmem:[%s691 + $0x34] sm:$0xf]
    %v706 = vld [vmem:[%s691 + $0x38] sm:$0xf]
    %v707 = vld [vmem:[%s691 + $0x3c] sm:$0xf]
    %v708 = vld [vmem:[#allocation7 + $0x3] sm:$0x1]
    %v709 = vlaneseq
    %v710 = vshrl.u32 %v709, 7
    %v711 = vsub.s32 0, %v710
    %v712 = vrot.slane %v708, %v711
    %v729 = vunpack.c.l.b16 %v692
    %v730 = vunpack.c.l.b16 %v693
    %v731 = vunpack.c.l.b16 %v694
    %v732 = vunpack.c.l.b16 %v695
    %v733 = vunpack.c.l.b16 %v696
    %v734 = vunpack.c.l.b16 %v697
    %v735 = vunpack.c.l.b16 %v698
    %v736 = vunpack.c.l.b16 %v699
    %v737 = vunpack.c.l.b16 %v700
    %v738 = vunpack.c.l.b16 %v701
    %v739 = vunpack.c.l.b16 %v702
    %v740 = vunpack.c.l.b16 %v703
    %v741 = vunpack.c.l.b16 %v704
    %v742 = vunpack.c.l.b16 %v705
    %v743 = vunpack.c.l.b16 %v706
    %v744 = vunpack.c.l.b16 %v707
    %v745 = vpack.c.b16 %v730, %v729
    %v746 = vpack.c.b16 %v732, %v731
    %v747 = vpack.c.b16 %v734, %v733
    %v748 = vpack.c.b16 %v736, %v735
    %v749 = vpack.c.b16 %v738, %v737
    %v750 = vpack.c.b16 %v740, %v739
    %v751 = vpack.c.b16 %v742, %v741
    %v752 = vpack.c.b16 %v744, %v743
    %761 = vmatprep.subr.bf16.mxu0 0
    %762 = vmatpush1.bf16.msra.mxu0 %v752
    %763 = vmatprep.subr.bf16.mxu0 0
    %764 = vmatpush1.bf16.msra.mxu0 %v751
    %765 = vmatprep.subr.bf16.mxu0 0
    %766 = vmatpush1.bf16.msra.mxu0 %v750
    %767 = vmatprep.subr.bf16.mxu0 0
    %768 = vmatpush1.bf16.msra.mxu0 %v749
    %769 = vmatprep.subr.bf16.mxu0 0
    %770 = vmatpush1.bf16.msra.mxu0 %v748
    %771 = vmatprep.subr.bf16.mxu0 0
    %772 = vmatpush1.bf16.msra.mxu0 %v747
    %773 = vmatprep.subr.bf16.mxu0 0
    %774 = vmatpush1.bf16.msra.mxu0 %v746
    %775 = vmatprep.subr.bf16.mxu0 0
    %776 = vmatpush1.bf16.msra.mxu0 %v745
    %777 = vmatprep.subr.bf16.mxu0 0
    %778 = vmatpush2.bf16.msra.mxu0 0
    %779 = vmatprep.subr.bf16.mxu0 0
    %780 = vmatpush2.bf16.msra.mxu0 0
    %781 = vmatprep.subr.bf16.mxu0 0
    %782 = vmatpush2.bf16.msra.mxu0 0
    %783 = vmatprep.subr.bf16.mxu0 0
    %784 = vmatpush2.bf16.msra.mxu0 0
    %785 = vmatprep.subr.bf16.mxu0 0
    %786 = vmatpush2.bf16.msra.mxu0 0
    %787 = vmatprep.subr.bf16.mxu0 0
    %788 = vmatpush2.bf16.msra.mxu0 0
    %789 = vmatprep.subr.bf16.mxu0 0
    %790 = vmatpush2.bf16.msra.mxu0 0
    %791 = vmatprep.subr.bf16.mxu0 0
    %792 = vmatpush2.bf16.msra.mxu0 0
    %793 = vmatprep.mubr.bf16.mxu0 0
    %794 = vmatmul.mubr.bf16.gmra.mxu0 %v683
    %v795 = vpop.f32.mrf.mxu0
    %v796 = vadd.f32 %v712, %v795
    %v797 = vpop.f32.mrf.mxu0
    %v798 = vpop.f32.mrf.mxu0
    %v799 = vadd.f32 %v712, %v798
    %v800 = vpop.f32.mrf.mxu0
    %801 = vmatprep.mubr.bf16.mxu0 0
    %802 = vmatmul.mubr.bf16.gmra.mxu0 %v684
    %v803 = vpop.f32.mrf.mxu0
    %v804 = vadd.f32 %v712, %v803
    %v805 = vpop.f32.mrf.mxu0
    %v806 = vpop.f32.mrf.mxu0
    %v807 = vadd.f32 %v712, %v806
    %v808 = vpop.f32.mrf.mxu0
    %809 = vmatprep.mubr.bf16.mxu0 0
    %810 = vmatmul.mubr.bf16.gmra.mxu0 %v685
    %v811 = vpop.f32.mrf.mxu0
    %v812 = vadd.f32 %v712, %v811
    %v813 = vpop.f32.mrf.mxu0
    %v814 = vpop.f32.mrf.mxu0
    %v815 = vadd.f32 %v712, %v814
    %v816 = vpop.f32.mrf.mxu0
    %817 = vmatprep.mubr.bf16.mxu0 0
    %818 = vmatmul.mubr.bf16.gmra.mxu0 %v686
    %v819 = vpop.f32.mrf.mxu0
    %v820 = vadd.f32 %v712, %v819
    %v821 = vpop.f32.mrf.mxu0
    %v822 = vpop.f32.mrf.mxu0
    %v823 = vadd.f32 %v712, %v822
    %v824 = vpop.f32.mrf.mxu0
    %825 = vmatprep.mubr.bf16.mxu0 0
    %826 = vmatmul.mubr.bf16.gmra.mxu0 %v687
    %v827 = vpop.f32.mrf.mxu0
    %v828 = vadd.f32 %v712, %v827
    %v829 = vpop.f32.mrf.mxu0
    %v830 = vpop.f32.mrf.mxu0
    %v831 = vadd.f32 %v712, %v830
    %v832 = vpop.f32.mrf.mxu0
    %833 = vmatprep.mubr.bf16.mxu0 0
    %834 = vmatmul.mubr.bf16.gmra.mxu0 %v688
    %v835 = vpop.f32.mrf.mxu0
    %v836 = vadd.f32 %v712, %v835
    %v837 = vpop.f32.mrf.mxu0
    %v838 = vpop.f32.mrf.mxu0
    %v839 = vadd.f32 %v712, %v838
    %v840 = vpop.f32.mrf.mxu0
    %841 = vmatprep.mubr.bf16.mxu0 0
    %842 = vmatmul.mubr.bf16.gmra.mxu0 %v689
    %v843 = vpop.f32.mrf.mxu0
    %v844 = vadd.f32 %v712, %v843
    %v845 = vpop.f32.mrf.mxu0
    %v846 = vpop.f32.mrf.mxu0
    %v847 = vadd.f32 %v712, %v846
    %v848 = vpop.f32.mrf.mxu0
    %849 = vmatprep.mubr.bf16.mxu0 0
    %850 = vmatmul.mubr.bf16.gmra.mxu0 %v690
    %v851 = vpop.f32.mrf.mxu0
    %v852 = vadd.f32 %v712, %v851
    %v853 = vpop.f32.mrf.mxu0
    %v854 = vpop.f32.mrf.mxu0
    %v855 = vadd.f32 %v712, %v854
    %v856 = vpop.f32.mrf.mxu0
    %857 = vdwg.mxu0
    %858 = vst [vmem:[#allocation8] sm:$0xff] %v796
    %859 = vst [vmem:[#allocation8 + $0x8] sm:$0xff] %v799
    %860 = vst [vmem:[#allocation8 + $0x10] sm:$0xff] %v804
    %861 = vst [vmem:[#allocation8 + $0x18] sm:$0xff] %v807
    %862 = vst [vmem:[#allocation8 + $0x20] sm:$0xff] %v812
    %863 = vst [vmem:[#allocation8 + $0x28] sm:$0xff] %v815
    %864 = vst [vmem:[#allocation8 + $0x30] sm:$0xff] %v820
    %865 = vst [vmem:[#allocation8 + $0x38] sm:$0xff] %v823
    %866 = vst [vmem:[#allocation8 + $0x40] sm:$0xff] %v828
    %867 = vst [vmem:[#allocation8 + $0x48] sm:$0xff] %v831
    %868 = vst [vmem:[#allocation8 + $0x50] sm:$0xff] %v836
    %869 = vst [vmem:[#allocation8 + $0x58] sm:$0xff] %v839
    %870 = vst [vmem:[#allocation8 + $0x60] sm:$0xff] %v844
    %871 = vst [vmem:[#allocation8 + $0x68] sm:$0xff] %v847
    %872 = vst [vmem:[#allocation8 + $0x70] sm:$0xff] %v852
    %873 = vst [vmem:[#allocation8 + $0x78] sm:$0xff] %v855
    // Predicated region
    $region26: #{tpu_custom_call.1} parent=1 // pred_check
      _
    $region27: #{tpu_custom_call.1} parent=1 // pred_check_branch
      %875 = sbr.rel (0) target = $region29
    $region28: #{tpu_custom_call.1} parent=1 // pred_region
      %s877 = ssub.s32 2048, 2048
      %878 = vsyncadd [#allocation4], %s877
      %s879 = sshll.u32 [#allocation8], 4
      %s880 = int_to_ptr.vmem [resolvable:$true] %s879
      %885 = dma.vmem_to_hbm [thread:$0]  %s880, 2048, %s3, [#allocation4], 128, 128, 8
    $region29: #{tpu_custom_call.1} parent=1 // pred_fallthru
      _
    // Predicated region
    $region30: #{tpu_custom_call.1} parent=1 // pred_check
      _
    $region31: #{tpu_custom_call.1} parent=1 // pred_check_branch
      %887 = sbr.rel (0) target = $region33
    $region32: #{tpu_custom_call.1} parent=1 // pred_region
      %888 = dma.done [#allocation4], 2048
    $region33: #{tpu_custom_call.1} parent=1 // pred_fallthru
      _
    %889 = vsyncpa [#allocation3], 1
    %890 = vsyncpa [#allocation6], 1
    %891 = vsyncpa [#allocation4], 1

</llo_original>
